<compile_context>
chip_gen: v5e
topology: v5e:2x2
jax: 0.10.0
libtpu: 0.0.40
codegen_flags: <defaults>
</compile_context>

<pallas_src>
import jax
import jax.numpy as jnp
from jax.experimental import pallas as pl
from jax.experimental.pallas import tpu as pltpu


def _round_up(v, m):
    return ((v + m - 1) // m) * m


def _cdiv(a, b):
    return (a + b - 1) // b


def _sublane_multiple(dtype):
    # Minimum second-to-last tile dim: 8 (32-bit), 16 (16-bit), 32 (8-bit).
    return max(8, 256 // (jnp.dtype(dtype).itemsize * 8))


def _tpu_generation():
    try:
        kind = jax.devices()[0].device_kind.lower()
    except Exception:
        return None
    if "7" in kind:
        return "v7"
    if "6" in kind:
        return "v6"
    if "5" in kind:
        return "v5"
    return None


def _default_tiles(gen):
    # (tm, tn, tk) upper bounds; clamped to the (padded) problem size below.
    if gen == "v5":
        # ~6 MiB bf16 double-buffered -> fits v5e's 16 MiB scoped VMEM default.
        return 512, 512, 1024
    # v6e (128 MiB VMEM) and v7x (64 MiB): ~10 MiB bf16 footprint, ~1 GFLOP
    # per grid step so the ~0.35 us/step overhead is fully amortized.
    return 512, 512, 2048


def _divisor_tile(limit, total, unit):
    """Largest multiple of `unit` that is <= limit and divides `total`
    (`total` is itself a multiple of `unit`)."""
    t = max(unit, (min(limit, total) // unit) * unit)
    while total % t:
        t -= unit
    return t


def _dense_relu_kernel_f32out(x_ref, w_ref, b_ref, o_ref):
    # f32 output: accumulate directly into the resident output block
    # (its index_map ignores k, so it stays in VMEM across the reduction).
    k = pl.program_id(2)

    @pl.when(k == 0)
    def _():
        o_ref[...] = jnp.zeros_like(o_ref)

    o_ref[...] += jnp.dot(x_ref[...], w_ref[...],
                          preferred_element_type=jnp.float32)

    @pl.when(k == pl.num_programs(2) - 1)
    def _():
        # Bias + ReLU applied exactly once, at reduction finalize.
        o_ref[...] = jnp.maximum(o_ref[...] + b_ref[...], 0.0)


def _dense_relu_kernel_scratch(x_ref, w_ref, b_ref, o_ref, acc_ref):
    # Low-precision output: keep an f32 VMEM accumulator, cast at finalize.
    k = pl.program_id(2)

    @pl.when(k == 0)
    def _():
        acc_ref[...] = jnp.zeros_like(acc_ref)

    acc_ref[...] += jnp.dot(x_ref[...], w_ref[...],
                            preferred_element_type=jnp.float32)

    @pl.when(k == pl.num_programs(2) - 1)
    def _():
        o_ref[...] = jnp.maximum(acc_ref[...] + b_ref[...],
                                 0.0).astype(o_ref.dtype)


def make_dense_relu(w, b, *, compute_dtype=jnp.bfloat16, out_dtype=None,
                    tm=None, tn=None, tk=None):
    """Build relu(x @ w + b) for fixed parameters.

    w: (In, Out)  [transpose of torch.nn.Linear.weight],  b: (Out,).
    Pads and casts the parameters ONCE here (hoisted out of the per-call hot
    path) and returns a jitted callable x:(B, In) -> (B, Out).
    TODO(synk): optionally take an fp8 compute_dtype on v7x (its MXU dropped
    integer support, so int8 weight paths are not drop-in there).
    """
    In, Out = w.shape
    assert b.shape == (Out,)

    gen = _tpu_generation()
    d_tm, d_tn, d_tk = _default_tiles(gen)
    tm = tm or d_tm
    tn = tn or d_tn
    tk = tk or d_tk

    compute_dtype = jnp.dtype(compute_dtype)

    # Lane-aligned padded parameter panel; tk/tn chosen as exact divisors so
    # the reduction/output axes never see partial (garbage) K blocks.
    Inp = _round_up(In, 128)
    Outp = _round_up(Out, 128)
    tk = _divisor_tile(tk, Inp, 128)
    tn = _divisor_tile(tn, Outp, 128)

    wp = jnp.pad(w, ((0, Inp - In), (0, Outp - Out))).astype(compute_dtype)
    bp = jnp.pad(b, (0, Outp - Out)).astype(jnp.float32).reshape(1, Outp)

    grid_n = Outp // tn
    grid_k = Inp // tk
    sub_m_in = _sublane_multiple(compute_dtype)

    @jax.jit
    def dense_relu(x):
        B, In_x = x.shape
        assert In_x == In, "x last dim must equal weight input size"
        o_dtype = jnp.dtype(out_dtype) if out_dtype is not None else x.dtype
        sub_m = max(sub_m_in, _sublane_multiple(o_dtype))

        # Pad the batch only to the sublane multiple; the M tail is handled by
        # a cdiv grid (partial last block) instead of padding B up to tm.
        Bp = _round_up(B, sub_m)
        tm_c = min(_round_up(tm, sub_m), Bp)
        grid_m = _cdiv(Bp, tm_c)

        # v7x has two TensorCores: make sure at least one parallel axis has
        # >= 2 tiles when the problem allows it.
        if gen == "v7" and grid_m == 1 and grid_n == 1 and Bp > sub_m:
            tm_c = _round_up(_cdiv(Bp, 2), sub_m)
            grid_m = _cdiv(Bp, tm_c)

        xp = x
        if (Bp, Inp) != (B, In):
            xp = jnp.pad(x, ((0, Bp - B), (0, Inp - In)))
        xp = xp.astype(compute_dtype)

        use_scratch = o_dtype != jnp.float32
        kernel = (_dense_relu_kernel_scratch if use_scratch
                  else _dense_relu_kernel_f32out)
        scratch = ([pltpu.VMEM((tm_c, tn), jnp.float32)]
                   if use_scratch else [])

        # VMEM budget: double-buffered x/w/out tiles (+ optional f32 scratch).
        in_bytes = compute_dtype.itemsize
        est = (2 * tm_c * tk * in_bytes + 2 * tk * tn * in_bytes
               + 2 * tm_c * tn * o_dtype.itemsize
               + (tm_c * tn * 4 if use_scratch else 0)
               + 2 * tn * 4)
        vmem_cap = (48 << 20) if gen == "v7" else (100 << 20)
        vmem_limit = int(min(vmem_cap, max(32 << 20, est + (4 << 20))))

        out_p = pl.pallas_call(
            kernel,
            out_shape=jax.ShapeDtypeStruct((Bp, Outp), o_dtype),
            grid=(grid_m, grid_n, grid_k),
            in_specs=[
                pl.BlockSpec((tm_c, tk), lambda i, j, k: (i, k)),
                pl.BlockSpec((tk, tn), lambda i, j, k: (k, j)),
                pl.BlockSpec((1, tn), lambda i, j, k: (0, j)),
            ],
            out_specs=pl.BlockSpec((tm_c, tn), lambda i, j, k: (i, j)),
            scratch_shapes=scratch,
            compiler_params=pltpu.CompilerParams(
                dimension_semantics=("parallel", "parallel", "arbitrary"),
                vmem_limit_bytes=vmem_limit,
            ),
        )(xp, wp, bp)

        if (Bp, Outp) != (B, Out):
            out_p = out_p[:B, :Out]
        return out_p

    return dense_relu


if __name__ == "__main__":
    key = jax.random.PRNGKey(0)
    k_x, k_w, k_b = jax.random.split(key, 3)

    batch, input_size, output_size = 8, 32, 16

    x = jax.random.normal(k_x, (batch, input_size), dtype=jnp.float32)
    # Params mimicking nn.Linear's uniform(-1/sqrt(In), 1/sqrt(In)) init.
    bound = 1.0 / (input_size ** 0.5)
    w = jax.random.uniform(k_w, (input_size, output_size),
                           minval=-bound, maxval=bound, dtype=jnp.float32)
    b = jax.random.uniform(k_b, (output_size,),
                           minval=-bound, maxval=bound, dtype=jnp.float32)

    dense_relu = make_dense_relu(w, b)          # pads/casts params once
    out = jax.block_until_ready(dense_relu(x))

    assert out.shape == (batch, output_size)
    assert out.dtype == jnp.float32

    # Reference using the same bf16-input / f32-accumulate MXU precision.
    ref_bf16 = jnp.maximum(
        jnp.dot(x.astype(jnp.bfloat16), w.astype(jnp.bfloat16),
                preferred_element_type=jnp.float32) + b, 0.0)
    assert jnp.allclose(out, ref_bf16, atol=1e-4, rtol=1e-4)

    # Loose check against the full-f32 reference (bf16 input rounding only).
    ref_f32 = jnp.maximum(x @ w + b, 0.0)
    assert jnp.allclose(out, ref_f32, atol=5e-2, rtol=5e-2)

    print("KERNEL_OK")
</pallas_src>

<mosaic_0001>
module attributes {stable_mosaic.version = 11 : i64} {
  func.func @_dense_relu_kernel_f32out(%arg0: i32, %arg1: i32, %arg2: i32, %arg3: memref<16x128xbf16, #tpu.memory_space<vmem>>, %arg4: memref<128x128xbf16, #tpu.memory_space<vmem>>, %arg5: memref<1x128xf32, #tpu.memory_space<vmem>>, %arg6: memref<16x128xf32, #tpu.memory_space<vmem>>) attributes {dimension_semantics = [#tpu.dimension_semantics<parallel>, #tpu.dimension_semantics<parallel>, #tpu.dimension_semantics<arbitrary>], iteration_bounds = array<i64: 1, 1, 1>, scalar_prefetch = 0 : i64, scratch_operands = 0 : i64, tpu.core_type = #tpu.core_type<tc>, window_params = [{transform_indices = @transform_0, window_bounds = array<i64: 16, 128>}, {transform_indices = @transform_1, window_bounds = array<i64: 128, 128>}, {transform_indices = @transform_2, window_bounds = array<i64: 1, 128>}, {transform_indices = @transform_3, window_bounds = array<i64: 16, 128>}]} {
    %c0_i32 = arith.constant 0 : i32
    %0 = arith.cmpi eq, %arg2, %c0_i32 : i32
    %1 = arith.extui %0 : i1 to i32
    %c0_i32_0 = arith.constant 0 : i32
    %2 = arith.cmpi ne, %1, %c0_i32_0 : i32
    scf.if %2 {
      %cst_10 = arith.constant 0.000000e+00 : f32
      %12 = vector.broadcast %cst_10 : f32 to vector<16x128xf32>
      %c0_11 = arith.constant 0 : index
      %c0_12 = arith.constant 0 : index
      %13 = vector.load %arg6[%c0_11, %c0_12] : memref<16x128xf32, #tpu.memory_space<vmem>>, vector<16x128xf32>
      tpu.vector_store %arg6[%c0_11, %c0_12], %12 {strides = array<i32>} : memref<16x128xf32, #tpu.memory_space<vmem>>, vector<16x128xf32>,
    } else {
    }
    %c0 = arith.constant 0 : index
    %c0_1 = arith.constant 0 : index
    %3 = vector.load %arg6[%c0, %c0_1] : memref<16x128xf32, #tpu.memory_space<vmem>>, vector<16x128xf32>
    %c0_2 = arith.constant 0 : index
    %c0_3 = arith.constant 0 : index
    %4 = vector.load %arg3[%c0_2, %c0_3] : memref<16x128xbf16, #tpu.memory_space<vmem>>, vector<16x128xbf16>
    %c0_4 = arith.constant 0 : index
    %c0_5 = arith.constant 0 : index
    %5 = vector.load %arg4[%c0_4, %c0_5] : memref<128x128xbf16, #tpu.memory_space<vmem>>, vector<128x128xbf16>
    %cst = arith.constant dense<0.000000e+00> : vector<16x128xf32>
    %6 = tpu.matmul %4, %5, %cst {dimension_numbers = #tpu.dot_dimension_numbers<[1], [0], [0], [1], [0, 0, 1, 1], [], []>} : vector<16x128xbf16>, vector<128x128xbf16>, vector<16x128xf32> -> vector<16x128xf32>
    %7 = arith.addf %3, %6 : vector<16x128xf32>
    %c0_6 = arith.constant 0 : index
    %c0_7 = arith.constant 0 : index
    %8 = vector.load %arg6[%c0_6, %c0_7] : memref<16x128xf32, #tpu.memory_space<vmem>>, vector<16x128xf32>
    tpu.vector_store %arg6[%c0_6, %c0_7], %7 {strides = array<i32>} : memref<16x128xf32, #tpu.memory_space<vmem>>, vector<16x128xf32>,
    %c0_i32_8 = arith.constant 0 : i32
    %9 = arith.cmpi eq, %arg2, %c0_i32_8 : i32
    %10 = arith.extui %9 : i1 to i32
    %c0_i32_9 = arith.constant 0 : i32
    %11 = arith.cmpi ne, %10, %c0_i32_9 : i32
    scf.if %11 {
      %c0_10 = arith.constant 0 : index
      %c0_11 = arith.constant 0 : index
      %12 = vector.load %arg6[%c0_10, %c0_11] : memref<16x128xf32, #tpu.memory_space<vmem>>, vector<16x128xf32>
      %c0_12 = arith.constant 0 : index
      %c0_13 = arith.constant 0 : index
      %13 = vector.load %arg5[%c0_12, %c0_13] : memref<1x128xf32, #tpu.memory_space<vmem>>, vector<1x128xf32>
      %14 = vector.broadcast %13 : vector<1x128xf32> to vector<16x128xf32>
      %15 = arith.addf %12, %14 : vector<16x128xf32>
      %cst_14 = arith.constant 0.000000e+00 : f32
      %16 = vector.broadcast %cst_14 : f32 to vector<16x128xf32>
      %17 = arith.maximumf %15, %16 : vector<16x128xf32>
      %c0_15 = arith.constant 0 : index
      %c0_16 = arith.constant 0 : index
      %18 = vector.load %arg6[%c0_15, %c0_16] : memref<16x128xf32, #tpu.memory_space<vmem>>, vector<16x128xf32>
      tpu.vector_store %arg6[%c0_15, %c0_16], %17 {strides = array<i32>} : memref<16x128xf32, #tpu.memory_space<vmem>>, vector<16x128xf32>,
    } else {
    }
    return
  }
  func.func @transform_0(%arg0: i32, %arg1: i32, %arg2: i32) -> (i32, i32) {
    %c0_i32 = arith.constant 0 : i32
    return %arg0, %arg2 : i32, i32
  }
  func.func @transform_1(%arg0: i32, %arg1: i32, %arg2: i32) -> (i32, i32) {
    %c0_i32 = arith.constant 0 : i32
    return %arg2, %arg1 : i32, i32
  }
  func.func @transform_2(%arg0: i32, %arg1: i32, %arg2: i32) -> (i32, i32) {
    %c0_i32 = arith.constant 0 : i32
    %c0_i32_0 = arith.constant 0 : i32
    return %c0_i32, %arg1 : i32, i32
  }
  func.func @transform_3(%arg0: i32, %arg1: i32, %arg2: i32) -> (i32, i32) {
    %c0_i32 = arith.constant 0 : i32
    return %arg0, %arg1 : i32, i32
  }
}

</mosaic_0001>

<llo_original>
// kernel: dense_relu.1
$region0: #{dense_relu.1}
  #allocation0 [shape = 'u32[]', space=smem, size = 0x4, offset = 0x4, fixed_abs, tag = 'smem constant byte address 0x4 - core index']
  #allocation1 [shape = 'u32[72,128]{1,0:T(1,128)}', space=vmem, size = 0x9000, scoped, tag = 'internal scratch']
  %s0 = inlined_call_operand.vmem [shape: bf16[16,128], index: 0, kind: input, shape index: {}]
  %s1 = inlined_call_operand.hbm [shape: bf16[128,128], index: 1, kind: input, shape index: {}]
  %s2 = inlined_call_operand.vmem [shape: f32[1,128], index: 2, kind: input, shape index: {}]
  %s3 = inlined_call_operand.vmem [shape: f32[16,128], index: 3, kind: output, shape index: {}]
  %s4 = sld [smem:[#allocation0]]
  $region34: #{dense_relu.1} parent=0
    _
  %s6 = ssub.s32 1, %s4
  %s7 = scalar_select 0, %s6, %s4
  $region1: #{dense_relu.1} parent=0
    #allocation2 [shape = 'u8[32768]{0}', space=vmem, size = 0x8000, scoped, tag = 'input window, operand 1, single buffered']
    #allocation3 [shape = 's32[1]{0}', space=sflag, size = 0x4, scoped, tag = 'scoped memory for dense_relu.1']
    %8 = vsyncpa [#allocation3], 0
    // Predicated region
    $region2: #{dense_relu.1} parent=1 // pred_check
      _
    $region3: #{dense_relu.1} parent=1 // pred_check_branch
      %10 = sbr.rel (0) target = $region5
    $region4: #{dense_relu.1} parent=1 // pred_region
      _
    $region5: #{dense_relu.1} parent=1 // pred_fallthru
      _
    // Predicated region
    $region6: #{dense_relu.1} parent=1 // pred_check
      _
    $region7: #{dense_relu.1} parent=1 // pred_check_branch
      %12 = sbr.rel (0) target = $region9
    $region8: #{dense_relu.1} parent=1 // pred_region
      %14 = vsyncadd [#allocation3], 0
      %s15 = sshll.u32 %s1, 4
      %s16 = int_to_ptr.hbm [resolvable:$true] %s15
      %s17 = sshll.u32 [#allocation2], 4
      %s18 = int_to_ptr.vmem [resolvable:$true] %s17
      %23 = dma.hbm_to_vmem [thread:$0]  %s16, 1024, %s18, [#allocation3], 64, 64, 4
    $region9: #{dense_relu.1} parent=1 // pred_fallthru
      _
    // Predicated region
    $region10: #{dense_relu.1} parent=1 // pred_check
      _
    $region11: #{dense_relu.1} parent=1 // pred_check_branch
      %25 = sbr.rel (0) target = $region13
    $region12: #{dense_relu.1} parent=1 // pred_region
      _
    $region13: #{dense_relu.1} parent=1 // pred_fallthru
      _
    // Predicated region
    $region14: #{dense_relu.1} parent=1 // pred_check
      _
    $region15: #{dense_relu.1} parent=1 // pred_check_branch
      %27 = sbr.rel (0) target = $region17
    $region16: #{dense_relu.1} parent=1 // pred_region
      %29 = dma.done [#allocation3], 1024
    $region17: #{dense_relu.1} parent=1 // pred_fallthru
      _
    %p30 = scmp.eq.s32.totalorder 0, 0
    // Predicated region
    $region18: #{dense_relu.1} parent=1 // pred_check
      %p31 = pneg %p30
    $region19: #{dense_relu.1} parent=1 // pred_check_branch
      %33 = sbr.rel (%p31) target = $region21
    $region20: #{dense_relu.1} parent=1 // pred_region
      %34 = vst [vmem:[%s3] sm:$0xff] 0.0
      %35 = vst [vmem:[%s3 + $0x8] sm:$0xff] 0.0
    $region21: #{dense_relu.1} parent=1 // pred_fallthru
      _
    %v36 = vld [vmem:[%s3] sm:$0xff]
    %v37 = vld [vmem:[%s3 + $0x8] sm:$0xff]
    %v38 = vld [vmem:[%s0] sm:$0xf]
    %v39 = vld [vmem:[%s0 + $0x4] sm:$0xf]
    %v40 = vld [vmem:[#allocation2] sm:$0xf]
    %v41 = vld [vmem:[#allocation2 + $0x4] sm:$0xf]
    %v42 = vld [vmem:[#allocation2 + $0x8] sm:$0xf]
    %v43 = vld [vmem:[#allocation2 + $0xc] sm:$0xf]
    %v44 = vld [vmem:[#allocation2 + $0x10] sm:$0xf]
    %v45 = vld [vmem:[#allocation2 + $0x14] sm:$0xf]
    %v46 = vld [vmem:[#allocation2 + $0x18] sm:$0xf]
    %v47 = vld [vmem:[#allocation2 + $0x1c] sm:$0xf]
    %v48 = vld [vmem:[#allocation2 + $0x20] sm:$0xf]
    %v49 = vld [vmem:[#allocation2 + $0x24] sm:$0xf]
    %v50 = vld [vmem:[#allocation2 + $0x28] sm:$0xf]
    %v51 = vld [vmem:[#allocation2 + $0x2c] sm:$0xf]
    %v52 = vld [vmem:[#allocation2 + $0x30] sm:$0xf]
    %v53 = vld [vmem:[#allocation2 + $0x34] sm:$0xf]
    %v54 = vld [vmem:[#allocation2 + $0x38] sm:$0xf]
    %v55 = vld [vmem:[#allocation2 + $0x3c] sm:$0xf]
    %v58 = vunpack.c.l.b16 %v38
    %v59 = vunpack.c.l.b16 %v39
    %v60 = vpack.c.b16 %v59, %v58
    %v78 = vunpack.c.l.b16 %v40
    %v79 = vunpack.c.l.b16 %v41
    %v80 = vunpack.c.l.b16 %v42
    %v81 = vunpack.c.l.b16 %v43
    %v82 = vunpack.c.l.b16 %v44
    %v83 = vunpack.c.l.b16 %v45
    %v84 = vunpack.c.l.b16 %v46
    %v85 = vunpack.c.l.b16 %v47
    %v86 = vunpack.c.l.b16 %v48
    %v87 = vunpack.c.l.b16 %v49
    %v88 = vunpack.c.l.b16 %v50
    %v89 = vunpack.c.l.b16 %v51
    %v90 = vunpack.c.l.b16 %v52
    %v91 = vunpack.c.l.b16 %v53
    %v92 = vunpack.c.l.b16 %v54
    %v93 = vunpack.c.l.b16 %v55
    %v94 = vpack.c.b16 %v79, %v78
    %v95 = vpack.c.b16 %v81, %v80
    %v96 = vpack.c.b16 %v83, %v82
    %v97 = vpack.c.b16 %v85, %v84
    %v98 = vpack.c.b16 %v87, %v86
    %v99 = vpack.c.b16 %v89, %v88
    %v100 = vpack.c.b16 %v91, %v90
    %v101 = vpack.c.b16 %v93, %v92
    %110 = vmatpush.bf16.msra.mxu0 %v101
    %111 = vmatpush.bf16.msra.mxu0 %v100
    %112 = vmatpush.bf16.msra.mxu0 %v99
    %113 = vmatpush.bf16.msra.mxu0 %v98
    %114 = vmatpush.bf16.msra.mxu0 %v97
    %115 = vmatpush.bf16.msra.mxu0 %v96
    %116 = vmatpush.bf16.msra.mxu0 %v95
    %117 = vmatpush.bf16.msra.mxu0 %v94
    %118 = vmatmul.bf16.gmra.mxu0 %v60
    %v119 = vpop.f32.mrf.mxu0
    %v120 = vadd.f32 0.0, %v119
    %v121 = vpop.f32.mrf.mxu0
    %v122 = vadd.f32 0.0, %v121
    %123 = vdwg.mxu0
    %v124 = vadd.f32 %v36, %v120
    %v125 = vadd.f32 %v37, %v122
    %126 = vst [vmem:[%s3] sm:$0xff] %v124
    %127 = vst [vmem:[%s3 + $0x8] sm:$0xff] %v125
    // Predicated region
    $region22: #{dense_relu.1} parent=1 // pred_check
      %p128 = pneg %p30
    $region23: #{dense_relu.1} parent=1 // pred_check_branch
      %130 = sbr.rel (%p128) target = $region25
    $region24: #{dense_relu.1} parent=1 // pred_region
      %v131 = vld [vmem:[%s3] sm:$0xff]
      %v132 = vld [vmem:[%s3 + $0x8] sm:$0xff]
      %v133 = vld [vmem:[%s2] sm:$0x1]
      %v135 = vperm.slane %v133, 0
      %v137 = vadd.f32 %v131, %v135
      %v138 = vadd.f32 %v132, %v135
      %v139 = vmax.f32 %v137, 0.0
      %v140 = vmax.f32 %v138, 0.0
      %141 = vst [vmem:[%s3] sm:$0xff] %v139
      %142 = vst [vmem:[%s3 + $0x8] sm:$0xff] %v140
    $region25: #{dense_relu.1} parent=1 // pred_fallthru
      _
    // Predicated region
    $region26: #{dense_relu.1} parent=1 // pred_check
      _
    $region27: #{dense_relu.1} parent=1 // pred_check_branch
      %144 = sbr.rel (0) target = $region29
    $region28: #{dense_relu.1} parent=1 // pred_region
      _
    $region29: #{dense_relu.1} parent=1 // pred_fallthru
      _
    // Predicated region
    $region30: #{dense_relu.1} parent=1 // pred_check
      _
    $region31: #{dense_relu.1} parent=1 // pred_check_branch
      %146 = sbr.rel (0) target = $region33
    $region32: #{dense_relu.1} parent=1 // pred_region
      _
    $region33: #{dense_relu.1} parent=1 // pred_fallthru
      _
    %147 = vsyncpa [#allocation3], 1

</llo_original>
